<compile_context>
chip_gen: v5e
topology: v5e:2x2
jax: 0.10.0
libtpu: 0.0.40
codegen_flags: <defaults>
</compile_context>

<pallas_src>
import functools

import jax
import jax.numpy as jnp
from jax import lax
from jax.experimental import pallas as pl
from jax.experimental.pallas import tpu as pltpu


NEG_SLOPE = 0.2            # PyG GATConv default leaky_relu slope
MASK_NEG = -1e30           # "minus infinity" for masked softmax (finite -> no inf/nan math)


def _round_up(a, b):
    return (a + b - 1) // b * b


def _choose_tile(n):
    """Destination/source node tile: 128 rows for large graphs, else the (8-aligned) full size."""
    return 128 if n > 128 else _round_up(max(n, 8), 8)


def _choose_proj_tile(n_pad, tile_d):
    """Projection kernel is HBM-bound: use larger row tiles when they divide n_pad."""
    for t in (512, 256):
        if n_pad % t == 0 and t > tile_d:
            return t
    return tile_d


def _vmem_limit_bytes():
    """Derive the scoped-VMEM limit from the chip (128 MiB on v5e/v6e, 64 MiB on v7x)."""
    try:
        cap = int(pltpu.get_tpu_info().vmem_capacity_bytes)
    except Exception:
        cap = 64 * 1024 * 1024
    return max(32 * 1024 * 1024, min(cap - 8 * 1024 * 1024, 100 * 1024 * 1024))


def _use_bf16_exp():
    """bf16 EUP path exists on v6e / v7x; v5e and earlier must keep exp in f32."""
    try:
        kind = jax.devices()[0].device_kind.lower()
    except Exception:
        return False
    return ("v6" in kind) or ("v7" in kind)


# ---------------------------------------------------------------------------
# Kernel A: projection xw = x @ W (bf16 out, f32 accumulate) + hoisted alpha logits
# ---------------------------------------------------------------------------
def _project_kernel(x_ref, w_ref, asrc_ref, adst_ref,
                    xw_ref, alpha_src_ref, alpha_dst_ref):
    xw = jnp.dot(x_ref[...], w_ref[...], preferred_element_type=jnp.float32)
    xw_bf = xw.astype(jnp.bfloat16)
    xw_ref[...] = xw_bf                                              # bf16 store (halves HBM)
    # alpha_dst[i, h] = <xw[i, hC:(h+1)C], att_dst[h]>   (block-diag operand, one matmul)
    alpha_dst_ref[...] = jnp.dot(xw_bf, adst_ref[...],
                                 preferred_element_type=jnp.float32)  # [TILE, H]
    # alpha_src_t[h, i] = <att_src[h], xw[i, hC:(h+1)C]> (A @ B^T, no XLU transpose)
    alpha_src_ref[...] = lax.dot_general(
        asrc_ref[...], xw_bf,
        dimension_numbers=(((1,), (1,)), ((), ())),
        preferred_element_type=jnp.float32)                           # [H, TILE]


def _project_and_alphas(x_bf, w_bf, att_src_rows, att_dst_mat, heads, tile_p, vmem_limit):
    n_pad, f_in = x_bf.shape
    hc = w_bf.shape[1]
    const1 = pl.Buffered(1)       # constant-index blocks: no double-buffering
    return pl.pallas_call(
        _project_kernel,
        out_shape=(
            jax.ShapeDtypeStruct((n_pad, hc), jnp.bfloat16),
            jax.ShapeDtypeStruct((heads, n_pad), jnp.float32),
            jax.ShapeDtypeStruct((n_pad, heads), jnp.float32),
        ),
        grid_spec=pltpu.PrefetchScalarGridSpec(
            num_scalar_prefetch=0,
            grid=(n_pad // tile_p,),
            in_specs=[
                pl.BlockSpec((tile_p, f_in), lambda i: (i, 0)),                        # x rows
                pl.BlockSpec((f_in, hc), lambda i: (0, 0), pipeline_mode=const1),      # W
                pl.BlockSpec((heads, hc), lambda i: (0, 0), pipeline_mode=const1),     # att_src
                pl.BlockSpec((hc, heads), lambda i: (0, 0), pipeline_mode=const1),     # att_dst
            ],
            out_specs=(
                pl.BlockSpec((tile_p, hc), lambda i: (i, 0)),        # xw (bf16)
                pl.BlockSpec((heads, tile_p), lambda i: (0, i)),     # alpha_src_t
                pl.BlockSpec((tile_p, heads), lambda i: (i, 0)),     # alpha_dst
            ),
        ),
        compiler_params=pltpu.CompilerParams(
            dimension_semantics=("parallel",),
            vmem_limit_bytes=vmem_limit),
    )(x_bf, w_bf, att_src_rows, att_dst_mat)


# ---------------------------------------------------------------------------
# Kernel B: flash-style masked softmax + aggregation over (dst-tile, src-tile) grid
# ---------------------------------------------------------------------------
def _attn_kernel(alpha_dst_ref, alpha_src_ref, xw_ref, bias_ref, adj_ref, out_ref,
                 m_ref, l_ref, acc_ref,
                 *, heads, out_ch, concat, apply_elu, exp_bf16):
    j = pl.program_id(1)

    @pl.when(j == 0)
    def _():
        m_ref[...] = jnp.full_like(m_ref, MASK_NEG)
        l_ref[...] = jnp.zeros_like(l_ref)
        acc_ref[...] = jnp.zeros_like(acc_ref)

    # Additive mask bias computed ONCE per (dst, src) block: 0 on edges, -1e30 elsewhere.
    mask_bias = (1.0 - adj_ref[...].astype(jnp.float32)) * MASK_NEG   # [TD, TS]

    a_dst = alpha_dst_ref[...]                                        # [TD, H]   f32
    a_src = alpha_src_ref[...]                                        # [H, TS]   f32
    xw_s = xw_ref[...]                                                # [TS, H*C] bf16

    for h in range(heads):           # static, small; running state lives in VMEM scratch
        e = a_dst[:, h:h + 1] + a_src[h:h + 1, :]                     # [TD, TS]
        e = jnp.maximum(e, NEG_SLOPE * e) + mask_bias                 # leaky relu + mask
        m_old = m_ref[:, h:h + 1]
        m_new = jnp.maximum(m_old, jnp.max(e, axis=-1, keepdims=True))
        scale = jnp.exp(m_old - m_new)
        if exp_bf16:
            # bf16 exp on v6e/v7x doubles EUP throughput; running sum stays f32.
            p = jnp.exp((e - m_new).astype(jnp.bfloat16))
            p_sum = jnp.sum(p, axis=-1, keepdims=True, dtype=jnp.float32)
            p_mm = p
        else:
            p = jnp.exp(e - m_new)
            p_sum = jnp.sum(p, axis=-1, keepdims=True)
            p_mm = p.astype(jnp.bfloat16)
        sl = slice(h * out_ch, (h + 1) * out_ch)                      # static column slice
        l_ref[:, h:h + 1] = scale * l_ref[:, h:h + 1] + p_sum
        acc_ref[:, sl] = scale * acc_ref[:, sl] + jnp.dot(
            p_mm, xw_s[:, sl], preferred_element_type=jnp.float32)
        m_ref[:, h:h + 1] = m_new

    @pl.when(j == pl.num_programs(1) - 1)
    def _():
        inv_l = pl.reciprocal(l_ref[...], approx=True)                # [TD, H]
        acc = acc_ref[...]
        bias = bias_ref[...]
        if concat:
            cols = [acc[:, h * out_ch:(h + 1) * out_ch] * inv_l[:, h:h + 1]
                    for h in range(heads)]
            res = jnp.concatenate(cols, axis=-1) + bias               # [TD, H*C]
        else:
            s = None
            for h in range(heads):
                c = acc[:, h * out_ch:(h + 1) * out_ch] * inv_l[:, h:h + 1]
                s = c if s is None else s + c
            res = s * (1.0 / heads) + bias                            # [TD, C]
        if apply_elu:
            res = jnp.where(res > 0, res, jnp.expm1(jnp.minimum(res, 0.0)))
        out_ref[...] = res.astype(out_ref.dtype)     # single lane-dense store per dst tile


def gat_conv_layer(x_bf, adj, layer_params, *, apply_elu, tile_d, tile_s, tile_p,
                   out_dtype, vmem_limit, exp_bf16):
    heads = layer_params["heads"]
    out_ch = layer_params["out_ch"]
    concat = layer_params["concat"]
    n_pad = x_bf.shape[0]
    hc = heads * out_ch
    out_dim = hc if concat else out_ch

    # Attention vectors restructured as matmul operands (built once, outside the kernels):
    #   att_src_rows[h, h*C:(h+1)*C] = att_src[h]   -> alpha_src_t = att_src_rows @ xw^T
    #   att_dst_mat[h*C + c, h]      = att_dst[h,c] -> alpha_dst   = xw @ att_dst_mat
    att_src = layer_params["att_src"]                      # [H, C]
    att_dst = layer_params["att_dst"]                      # [H, C]
    eye = jnp.eye(heads, dtype=jnp.float32)
    att_src_rows = (eye[:, :, None] * att_src[None, :, :]).reshape(heads, hc).astype(jnp.bfloat16)
    att_dst_mat = (eye[:, :, None] * att_dst[None, :, :]).reshape(heads, hc).T.astype(jnp.bfloat16)
    w_bf = layer_params["w"].astype(jnp.bfloat16)

    # Kernel A: projection + hoisted alpha logits (computed exactly once per node).
    xw, alpha_src_t, alpha_dst = _project_and_alphas(
        x_bf, w_bf, att_src_rows, att_dst_mat, heads, tile_p, vmem_limit)

    grid = (n_pad // tile_d, n_pad // tile_s)       # (dst tiles parallel, src tiles arbitrary)
    kernel = functools.partial(_attn_kernel, heads=heads, out_ch=out_ch,
                               concat=concat, apply_elu=apply_elu, exp_bf16=exp_bf16)
    cost = pl.CostEstimate(
        flops=int(2 * n_pad * n_pad * hc + 6 * n_pad * n_pad * heads),
        transcendentals=int(heads * n_pad * n_pad),
        bytes_accessed=int(n_pad * n_pad                      # adj int8
                           + (n_pad // tile_d) * n_pad * hc * 2   # xw bf16 re-streamed per dst tile
                           + 8 * n_pad * heads
                           + n_pad * out_dim * (2 if out_dtype == jnp.bfloat16 else 4)))

    return pl.pallas_call(
        kernel,
        out_shape=jax.ShapeDtypeStruct((n_pad, out_dim), out_dtype),
        grid_spec=pltpu.PrefetchScalarGridSpec(
            num_scalar_prefetch=0,
            grid=grid,
            in_specs=[
                pl.BlockSpec((tile_d, heads), lambda i, j: (i, 0)),      # alpha_dst (per dst tile)
                pl.BlockSpec((heads, tile_s), lambda i, j: (0, j)),      # alpha_src_t (per src tile)
                pl.BlockSpec((tile_s, hc), lambda i, j: (j, 0)),         # xw source slice (bf16)
                pl.BlockSpec((1, out_dim), lambda i, j: (0, 0),
                             pipeline_mode=pl.Buffered(1)),              # bias (constant)
                pl.BlockSpec((tile_d, tile_s), lambda i, j: (i, j)),     # adj block (int8)
            ],
            out_specs=pl.BlockSpec((tile_d, out_dim), lambda i, j: (i, 0)),
            scratch_shapes=[
                pltpu.VMEM((tile_d, heads), jnp.float32),   # running max
                pltpu.VMEM((tile_d, heads), jnp.float32),   # running sum
                pltpu.VMEM((tile_d, hc), jnp.float32),      # output accumulator
            ],
        ),
        compiler_params=pltpu.CompilerParams(
            dimension_semantics=("parallel", "arbitrary"),   # dst tiles across cores, src reduced
            vmem_limit_bytes=vmem_limit),
        cost_estimate=cost,
    )(alpha_dst, alpha_src_t, xw, layer_params["bias"], adj)


def build_dense_adj(edge_index, num_nodes, num_nodes_padded):
    """int8 adj[i, j] = 1 iff there is an edge j -> i; self-loops on real nodes (PyG default).

    Padded rows/cols stay all-zero: padded nodes never contribute as sources and their
    (garbage but finite) outputs are sliced off at the end.
    Note: duplicate edges collapse to a single entry (dense-mask semantics)."""
    src, dst = edge_index[0], edge_index[1]
    adj = jnp.zeros((num_nodes_padded, num_nodes_padded), jnp.int8)
    adj = adj.at[dst, src].set(1)
    idx = jnp.arange(num_nodes)
    adj = adj.at[idx, idx].set(1)
    return adj


def gat_forward(x, edge_index, params):
    """Mirrors GAT.forward: (conv -> ELU -> dropout[eval no-op]) * (L-1) -> conv."""
    n = x.shape[0]
    tile_d = _choose_tile(n)
    tile_s = tile_d
    n_pad = _round_up(n, tile_d)
    tile_p = _choose_proj_tile(n_pad, tile_d)
    vmem_limit = _vmem_limit_bytes()
    exp_bf16 = _use_bf16_exp()

    adj = build_dense_adj(edge_index, n, n_pad)
    if n_pad != n:
        x = jnp.pad(x, ((0, n_pad - n), (0, 0)))
    h = x.astype(jnp.bfloat16)                    # bf16 activations between kernels/layers
    num_layers = len(params)
    for i, p in enumerate(params):
        last = (i == num_layers - 1)
        out_dtype = jnp.float32 if last else jnp.bfloat16
        h = gat_conv_layer(h, adj, p, apply_elu=not last,
                           tile_d=tile_d, tile_s=tile_s, tile_p=tile_p,
                           out_dtype=out_dtype, vmem_limit=vmem_limit,
                           exp_bf16=exp_bf16)
        # dropout (p=0.5) is identity in eval mode
    return h[:n]


def _glorot(key, shape):
    fan_in, fan_out = shape[-2], shape[-1]
    a = (6.0 / (fan_in + fan_out)) ** 0.5
    return jax.random.uniform(key, shape, jnp.float32, -a, a)


def init_gat_params(key, input_dim, hidden_dim, output_dim,
                    num_layers=2, heads=8, output_heads=1):
    """Deterministic parameter init matching GATConv shapes."""
    dims = []
    dims.append((input_dim, hidden_dim, heads, True))
    for _ in range(num_layers - 2):
        dims.append((hidden_dim * heads, hidden_dim, heads, True))
    dims.append((hidden_dim * heads, output_dim, output_heads, False))

    params = []
    for (in_ch, out_ch, h, concat) in dims:
        key, k_w, k_s, k_d = jax.random.split(key, 4)
        w = _glorot(k_w, (in_ch, h * out_ch))              # x @ W
        att_src = _glorot(k_s, (h, out_ch))
        att_dst = _glorot(k_d, (h, out_ch))
        bias = jnp.zeros((1, h * out_ch if concat else out_ch), jnp.float32)
        params.append(dict(w=w, att_src=att_src, att_dst=att_dst, bias=bias,
                           heads=h, out_ch=out_ch, concat=concat))
    return params


if __name__ == "__main__":
    key = jax.random.PRNGKey(0)
    k_x, k_src, k_dst, k_par = jax.random.split(key, 4)

    # small shapes consistent with the module
    num_nodes = 16
    input_dim, hidden_dim, output_dim = 8, 8, 4
    num_layers, heads, output_heads = 2, 4, 1
    num_edges = 40

    x = jax.random.normal(k_x, (num_nodes, input_dim), jnp.float32)
    src = jax.random.randint(k_src, (num_edges,), 0, num_nodes)
    dst = jax.random.randint(k_dst, (num_edges,), 0, num_nodes)
    edge_index = jnp.stack([src, dst], axis=0)             # [2, num_edges]

    params = init_gat_params(k_par, input_dim, hidden_dim, output_dim,
                             num_layers=num_layers, heads=heads,
                             output_heads=output_heads)

    out = gat_forward(x, edge_index, params)
    out = jax.block_until_ready(out)
    assert out.shape == (num_nodes, output_dim), out.shape
    assert bool(jnp.all(jnp.isfinite(out)))
    print("KERNEL_OK")
</pallas_src>

<mosaic_0001>
module attributes {stable_mosaic.version = 11 : i64} {
  func.func @_project_kernel(%arg0: i32, %arg1: memref<16x8xbf16, #tpu.memory_space<vmem>>, %arg2: memref<8x32xbf16, #tpu.memory_space<vmem>>, %arg3: memref<4x32xbf16, #tpu.memory_space<vmem>>, %arg4: memref<32x4xbf16, #tpu.memory_space<vmem>>, %arg5: memref<16x32xbf16, #tpu.memory_space<vmem>>, %arg6: memref<4x16xf32, #tpu.memory_space<vmem>>, %arg7: memref<16x4xf32, #tpu.memory_space<vmem>>) attributes {dimension_semantics = [#tpu.dimension_semantics<parallel>], iteration_bounds = array<i64: 1>, scalar_prefetch = 0 : i64, scratch_operands = 0 : i64, tpu.core_type = #tpu.core_type<tc>, window_params = [{transform_indices = @transform_0, window_bounds = array<i64: 16, 8>}, {pipeline_mode = #tpu.pipeline_mode<synchronous>, transform_indices = @transform_1, window_bounds = array<i64: 8, 32>}, {pipeline_mode = #tpu.pipeline_mode<synchronous>, transform_indices = @transform_2, window_bounds = array<i64: 4, 32>}, {pipeline_mode = #tpu.pipeline_mode<synchronous>, transform_indices = @transform_3, window_bounds = array<i64: 32, 4>}, {transform_indices = @transform_4, window_bounds = array<i64: 16, 32>}, {transform_indices = @transform_5, window_bounds = array<i64: 4, 16>}, {transform_indices = @transform_6, window_bounds = array<i64: 16, 4>}]} {
    %c0 = arith.constant 0 : index
    %c0_0 = arith.constant 0 : index
    %0 = vector.load %arg1[%c0, %c0_0] : memref<16x8xbf16, #tpu.memory_space<vmem>>, vector<16x8xbf16>
    %c0_1 = arith.constant 0 : index
    %c0_2 = arith.constant 0 : index
    %1 = vector.load %arg2[%c0_1, %c0_2] : memref<8x32xbf16, #tpu.memory_space<vmem>>, vector<8x32xbf16>
    %cst = arith.constant dense<0.000000e+00> : vector<16x32xf32>
    %2 = tpu.matmul %0, %1, %cst {dimension_numbers = #tpu.dot_dimension_numbers<[1], [0], [0], [1], [0, 0, 1, 1], [], []>} : vector<16x8xbf16>, vector<8x32xbf16>, vector<16x32xf32> -> vector<16x32xf32>
    %3 = arith.truncf %2 : vector<16x32xf32> to vector<16x32xbf16>
    %c0_3 = arith.constant 0 : index
    %c0_4 = arith.constant 0 : index
    %4 = vector.load %arg5[%c0_3, %c0_4] : memref<16x32xbf16, #tpu.memory_space<vmem>>, vector<16x32xbf16>
    tpu.vector_store %arg5[%c0_3, %c0_4], %3 {strides = array<i32>} : memref<16x32xbf16, #tpu.memory_space<vmem>>, vector<16x32xbf16>,
    %c0_5 = arith.constant 0 : index
    %c0_6 = arith.constant 0 : index
    %5 = vector.load %arg4[%c0_5, %c0_6] : memref<32x4xbf16, #tpu.memory_space<vmem>>, vector<32x4xbf16>
    %cst_7 = arith.constant dense<0.000000e+00> : vector<16x4xf32>
    %6 = tpu.matmul %3, %5, %cst_7 {dimension_numbers = #tpu.dot_dimension_numbers<[1], [0], [0], [1], [0, 0, 1, 1], [], []>} : vector<16x32xbf16>, vector<32x4xbf16>, vector<16x4xf32> -> vector<16x4xf32>
    %c0_8 = arith.constant 0 : index
    %c0_9 = arith.constant 0 : index
    %7 = vector.load %arg7[%c0_8, %c0_9] : memref<16x4xf32, #tpu.memory_space<vmem>>, vector<16x4xf32>
    tpu.vector_store %arg7[%c0_8, %c0_9], %6 {strides = array<i32>} : memref<16x4xf32, #tpu.memory_space<vmem>>, vector<16x4xf32>,
    %c0_10 = arith.constant 0 : index
    %c0_11 = arith.constant 0 : index
    %8 = vector.load %arg3[%c0_10, %c0_11] : memref<4x32xbf16, #tpu.memory_space<vmem>>, vector<4x32xbf16>
    %cst_12 = arith.constant dense<0.000000e+00> : vector<4x16xf32>
    %9 = tpu.matmul %8, %3, %cst_12 {dimension_numbers = #tpu.dot_dimension_numbers<[1], [1], [0], [0], [0, 0, 1, 0], [], []>} : vector<4x32xbf16>, vector<16x32xbf16>, vector<4x16xf32> -> vector<4x16xf32>
    %c0_13 = arith.constant 0 : index
    %c0_14 = arith.constant 0 : index
    %10 = vector.load %arg6[%c0_13, %c0_14] : memref<4x16xf32, #tpu.memory_space<vmem>>, vector<4x16xf32>
    tpu.vector_store %arg6[%c0_13, %c0_14], %9 {strides = array<i32>} : memref<4x16xf32, #tpu.memory_space<vmem>>, vector<4x16xf32>,
    return
  }
  func.func @transform_0(%arg0: i32) -> (i32, i32) {
    %c0_i32 = arith.constant 0 : i32
    %c0_i32_0 = arith.constant 0 : i32
    return %arg0, %c0_i32 : i32, i32
  }
  func.func @transform_1(%arg0: i32) -> (i32, i32) {
    %c0_i32 = arith.constant 0 : i32
    %c0_i32_0 = arith.constant 0 : i32
    %c0_i32_1 = arith.constant 0 : i32
    return %c0_i32, %c0_i32_0 : i32, i32
  }
  func.func @transform_2(%arg0: i32) -> (i32, i32) {
    %c0_i32 = arith.constant 0 : i32
    %c0_i32_0 = arith.constant 0 : i32
    %c0_i32_1 = arith.constant 0 : i32
    return %c0_i32, %c0_i32_0 : i32, i32
  }
  func.func @transform_3(%arg0: i32) -> (i32, i32) {
    %c0_i32 = arith.constant 0 : i32
    %c0_i32_0 = arith.constant 0 : i32
    %c0_i32_1 = arith.constant 0 : i32
    return %c0_i32, %c0_i32_0 : i32, i32
  }
  func.func @transform_4(%arg0: i32) -> (i32, i32) {
    %c0_i32 = arith.constant 0 : i32
    %c0_i32_0 = arith.constant 0 : i32
    return %arg0, %c0_i32 : i32, i32
  }
  func.func @transform_5(%arg0: i32) -> (i32, i32) {
    %c0_i32 = arith.constant 0 : i32
    %c0_i32_0 = arith.constant 0 : i32
    return %c0_i32, %arg0 : i32, i32
  }
  func.func @transform_6(%arg0: i32) -> (i32, i32) {
    %c0_i32 = arith.constant 0 : i32
    %c0_i32_0 = arith.constant 0 : i32
    return %arg0, %c0_i32 : i32, i32
  }
}

</mosaic_0001>

<llo_original>
// kernel: tpu_custom_call.1
$region0: #{tpu_custom_call.1}
  #allocation0 [shape = 'u32[]', space=smem, size = 0x4, offset = 0x4, fixed_abs, tag = 'smem constant byte address 0x4 - core index']
  #allocation1 [shape = 'u32[72,128]{1,0:T(1,128)}', space=vmem, size = 0x9000, scoped, tag = 'internal scratch']
  %s0 = inlined_call_operand.vmem [shape: bf16[16,8], index: 0, kind: input, shape index: {}]
  %s1 = inlined_call_operand.vmem [shape: bf16[8,32], index: 1, kind: input, shape index: {}]
  %s2 = inlined_call_operand.vmem [shape: bf16[4,32], index: 2, kind: input, shape index: {}]
  %s3 = inlined_call_operand.vmem [shape: bf16[32,4], index: 3, kind: input, shape index: {}]
  %s4 = inlined_call_operand.hbm [shape: bf16[16,32], index: 4, kind: output, shape index: {0}]
  %s5 = inlined_call_operand.hbm [shape: f32[4,16], index: 5, kind: output, shape index: {1}]
  %s6 = inlined_call_operand.vmem [shape: f32[16,4], index: 6, kind: output, shape index: {2}]
  %7 = xla_tuple %s4, %s5, %s6
  %s8 = sld [smem:[#allocation0]]
  $region42: #{tpu_custom_call.1} parent=0
    _
  %s10 = ssub.s32 1, %s8
  %s11 = scalar_select 0, %s10, %s8
  $region1: #{tpu_custom_call.1} parent=0
    #allocation2 [shape = 'u8[4096]{0}', space=vmem, size = 0x1000, scoped, tag = 'output window, operand 0, single buffered']
    #allocation3 [shape = 's32[1]{0}', space=sflag, size = 0x4, scoped, tag = 'scoped memory for tpu_custom_call.1']
    #allocation4 [shape = 'u8[2048]{0}', space=vmem, size = 0x800, scoped, tag = 'output window, operand 1, single buffered']
    #allocation5 [shape = 's32[1]{0}', space=sflag, size = 0x4, scoped, tag = 'scoped memory for tpu_custom_call.1']
    %12 = vsyncpa [#allocation3], 0
    %13 = vsyncpa [#allocation5], 0
    // Predicated region
    $region2: #{tpu_custom_call.1} parent=1 // pred_check
      _
    $region3: #{tpu_custom_call.1} parent=1 // pred_check_branch
      %15 = sbr.rel (0) target = $region5
    $region4: #{tpu_custom_call.1} parent=1 // pred_region
      _
    $region5: #{tpu_custom_call.1} parent=1 // pred_fallthru
      _
    // Predicated region
    $region6: #{tpu_custom_call.1} parent=1 // pred_check
      _
    $region7: #{tpu_custom_call.1} parent=1 // pred_check_branch
      %17 = sbr.rel (0) target = $region9
    $region8: #{tpu_custom_call.1} parent=1 // pred_region
      _
    $region9: #{tpu_custom_call.1} parent=1 // pred_fallthru
      _
    // Predicated region
    $region10: #{tpu_custom_call.1} parent=1 // pred_check
      _
    $region11: #{tpu_custom_call.1} parent=1 // pred_check_branch
      %19 = sbr.rel (0) target = $region13
    $region12: #{tpu_custom_call.1} parent=1 // pred_region
      _
    $region13: #{tpu_custom_call.1} parent=1 // pred_fallthru
      _
    // Predicated region
    $region14: #{tpu_custom_call.1} parent=1 // pred_check
      _
    $region15: #{tpu_custom_call.1} parent=1 // pred_check_branch
      %21 = sbr.rel (0) target = $region17
    $region16: #{tpu_custom_call.1} parent=1 // pred_region
      _
    $region17: #{tpu_custom_call.1} parent=1 // pred_fallthru
      _
    %v23 = vld [vmem:[%s0] sm:$0xf]
    %v24 = vld [vmem:[%s0 + $0x4] sm:$0xf]
    %v25 = vld [vmem:[%s1] sm:$0xf]
    %v28 = vunpack.c.l.b16 %v23
    %v29 = vunpack.c.l.b16 %v24
    %v30 = vpack.c.b16 %v29, %v28
    %vm31 = vcmask 64512
    %v33 = vsel %vm31, %v30, 0
    %vm35 = vcmask 1043456
    %v37 = vsel %vm35, %v25, 0
    %39 = vmatpush.bf16.msra.mxu0 0
    %40 = vmatpush.bf16.msra.mxu0 0
    %41 = vmatpush.bf16.msra.mxu0 0
    %42 = vmatpush.bf16.msra.mxu0 0
    %43 = vmatpush.bf16.msra.mxu0 0
    %44 = vmatpush.bf16.msra.mxu0 0
    %45 = vmatpush.bf16.msra.mxu0 0
    %46 = vmatpush.bf16.msra.mxu0 %v37
    %47 = vmatmul.bf16.gmra.mxu0 %v33
    %v48 = vpop.f32.mrf.mxu0
    %v49 = vadd.f32 0.0, %v48
    %v50 = vpop.f32.mrf.mxu0
    %v51 = vadd.f32 0.0, %v50
    %52 = vdwg.mxu0
    %v53 = vpack.c.bf16 %v49, %v49
    %v54 = vpack.c.bf16 %v51, %v51
    %vm55 = vcmask 257024
    %56 = vst.msk [vmem:[#allocation2] sm:$0xf] %vm55, %v53
    %57 = vst.msk [vmem:[#allocation2 + $0x4] sm:$0xf] %vm55, %v54
    %v58 = vld [vmem:[%s3] sm:$0xf]
    %v59 = vld [vmem:[%s3 + $0x4] sm:$0xf]
    %v60 = vld [vmem:[%s3 + $0x8] sm:$0xf]
    %v61 = vld [vmem:[%s3 + $0xc] sm:$0xf]
    %v64 = vunpack.c.l.b16 %v53
    %v65 = vunpack.c.l.b16 %v54
    %v66 = vpack.c.b16 %v65, %v64
    %v71 = vunpack.c.l.b16 %v58
    %v72 = vunpack.c.l.b16 %v59
    %v73 = vunpack.c.l.b16 %v60
    %v74 = vunpack.c.l.b16 %v61
    %v75 = vpack.c.b16 %v72, %v71
    %v76 = vpack.c.b16 %v74, %v73
    %vm79 = vcmask 261120
    %v81 = vsel %vm79, %v66, 0
    %83 = vmatpush.bf16.msra.mxu0 0
    %84 = vmatpush.bf16.msra.mxu0 0
    %85 = vmatpush.bf16.msra.mxu0 0
    %86 = vmatpush.bf16.msra.mxu0 0
    %87 = vmatpush.bf16.msra.mxu0 0
    %88 = vmatpush.bf16.msra.mxu0 0
    %89 = vmatpush.bf16.msra.mxu0 %v76
    %90 = vmatpush.bf16.msra.mxu0 %v75
    %91 = vmatmul.bf16.gmra.mxu0 %v81
    %v92 = vpop.f32.mrf.mxu0
    %v93 = vadd.f32 0.0, %v92
    %v94 = vpop.f32.mrf.mxu0
    %v95 = vadd.f32 0.0, %v94
    %96 = vdwg.mxu0
    %vm97 = vcmask 31744
    %98 = vst.msk [vmem:[%s6] sm:$0xff] %vm97, %v93
    %99 = vst.msk [vmem:[%s6 + $0x8] sm:$0xff] %vm97, %v95
    %v100 = vld [vmem:[%s2] sm:$0x3]
    %v102 = vsel %vm79, %v100, 0
    %104 = vmatpush.bf16.xpose.msra.mxu0 0
    %105 = vmatpush.bf16.xpose.msra.mxu0 0
    %106 = vmatpush.bf16.xpose.msra.mxu0 0
    %107 = vmatpush.bf16.xpose.msra.mxu0 0
    %108 = vmatpush.bf16.xpose.msra.mxu0 0
    %109 = vmatpush.bf16.xpose.msra.mxu0 0
    %110 = vmatpush.bf16.xpose.msra.mxu0 0
    %111 = vmatpush.bf16.xpose.msra.mxu0 %v81
    %112 = vmatmul.bf16.gmra.mxu0 %v102
    %v113 = vpop.f32.mrf.mxu0
    %v114 = vadd.f32 0.0, %v113
    %v115 = vpop.f32.mrf.mxu0
    %116 = vdwg.mxu0
    %vm117 = vcmask 125952
    %118 = vst.msk [vmem:[#allocation4] sm:$0xf] %vm117, %v114
    // Predicated region
    $region18: #{tpu_custom_call.1} parent=1 // pred_check
      _
    $region19: #{tpu_custom_call.1} parent=1 // pred_check_branch
      %120 = sbr.rel (0) target = $region21
    $region20: #{tpu_custom_call.1} parent=1 // pred_region
      %122 = vsyncadd [#allocation3], 0
      %s123 = sshll.u32 [#allocation2], 4
      %s124 = int_to_ptr.vmem [resolvable:$true] %s123
      %s125 = sshll.u32 %s4, 4
      %s126 = int_to_ptr.hbm [resolvable:$true] %s125
      %131 = dma.vmem_to_hbm [thread:$0]  %s124, 128, %s126, [#allocation3], 64, 64, 4
    $region21: #{tpu_custom_call.1} parent=1 // pred_fallthru
      _
    // Predicated region
    $region22: #{tpu_custom_call.1} parent=1 // pred_check
      _
    $region23: #{tpu_custom_call.1} parent=1 // pred_check_branch
      %133 = sbr.rel (0) target = $region25
    $region24: #{tpu_custom_call.1} parent=1 // pred_region
      %135 = vsyncadd [#allocation5], 0
      %s137 = sshll.u32 [#allocation4], 4
      %s138 = int_to_ptr.vmem [resolvable:$true] %s137
      %s139 = sshll.u32 %s5, 4
      %s140 = int_to_ptr.hbm [resolvable:$true] %s139
      %142 = dma.vmem_to_hbm [thread:$0]  %s138, 64, %s140, [#allocation5]
    $region25: #{tpu_custom_call.1} parent=1 // pred_fallthru
      _
    // Predicated region
    $region26: #{tpu_custom_call.1} parent=1 // pred_check
      _
    $region27: #{tpu_custom_call.1} parent=1 // pred_check_branch
      %144 = sbr.rel (0) target = $region29
    $region28: #{tpu_custom_call.1} parent=1 // pred_region
      _
    $region29: #{tpu_custom_call.1} parent=1 // pred_fallthru
      _
    // Predicated region
    $region30: #{tpu_custom_call.1} parent=1 // pred_check
      _
    $region31: #{tpu_custom_call.1} parent=1 // pred_check_branch
      %146 = sbr.rel (0) target = $region33
    $region32: #{tpu_custom_call.1} parent=1 // pred_region
      %148 = dma.done [#allocation3], 128
    $region33: #{tpu_custom_call.1} parent=1 // pred_fallthru
      _
    // Predicated region
    $region34: #{tpu_custom_call.1} parent=1 // pred_check
      _
    $region35: #{tpu_custom_call.1} parent=1 // pred_check_branch
      %150 = sbr.rel (0) target = $region37
    $region36: #{tpu_custom_call.1} parent=1 // pred_region
      %152 = dma.done [#allocation5], 64
    $region37: #{tpu_custom_call.1} parent=1 // pred_fallthru
      _
    // Predicated region
    $region38: #{tpu_custom_call.1} parent=1 // pred_check
      _
    $region39: #{tpu_custom_call.1} parent=1 // pred_check_branch
      %154 = sbr.rel (0) target = $region41
    $region40: #{tpu_custom_call.1} parent=1 // pred_region
      _
    $region41: #{tpu_custom_call.1} parent=1 // pred_fallthru
      _
    %155 = vsyncpa [#allocation3], 1
    %156 = vsyncpa [#allocation5], 1

</llo_original>
